<compile_context>
chip_gen: v5e
topology: v5e:2x2
jax: 0.10.0
libtpu: 0.0.40
codegen_flags: <defaults>
</compile_context>

<pallas_src>
import jax
import jax.numpy as jnp
from jax.experimental import pallas as pl
from jax.experimental.pallas import tpu as pltpu


# ----------------------------- kernel ---------------------------------------


def autoencoder_kernel(x_ref, w1_ref, wpack_ref, wd3t_ref, bpack_ref, bd3_ref, out_ref):
    f32 = jnp.float32
    mxu = w1_ref.dtype                      # bf16 operands for the MXU, f32 accumulation

    def dense_relu(a, w, b):
        y = jnp.dot(a, w, preferred_element_type=f32) + b
        # Cast to bf16 right after the ReLU: the only consumer is the next matmul
        # (which would cast anyway) -> identical numerics, half the live vreg footprint.
        return jnp.maximum(y, 0.0).astype(mxu)

    x = x_ref[...].astype(mxu)                                   # f32 -> bf16 in-kernel

    # ---- encoder: Linear->ReLU x3 (feature dims padded to 128) ----
    h   = dense_relu(x,   w1_ref[...],  bpack_ref[0:1, :])       # (tile_b, 128)
    h   = dense_relu(h,   wpack_ref[0], bpack_ref[1:2, :])       # (tile_b, 128)  (64 padded)
    enc = dense_relu(h,   wpack_ref[1], bpack_ref[2:3, :])       # (tile_b, 128)  (E padded)

    # ---- attention: softmax over the size-1 axis == 1.0 exactly, so
    #      enc + enc*attn == 2*enc; the exact x2 is pre-folded into wd1.
    # ---- decoder: Linear->ReLU, Linear->ReLU, Linear(128 -> 1) ----
    d   = dense_relu(enc, wpack_ref[2], bpack_ref[3:4, :])       # (tile_b, 128)  (wd1 * 2)
    d   = dense_relu(d,   wpack_ref[3], bpack_ref[4:5, :])       # (tile_b, 128)

    # Final 128 -> 1 projection as (1,128) @ (tile_b,128)^T -> lane-dense (1, tile_b).
    out_row = jax.lax.dot_general(
        wd3t_ref[...], d,
        dimension_numbers=(((1,), (1,)), ((), ())),
        preferred_element_type=f32)                               # (1, tile_b)
    out_ref[...] = (out_row + bd3_ref[...]).astype(out_ref.dtype)


# ----------------------------- wrapper ---------------------------------------


def _round_up(n, m):
    return ((n + m - 1) // m) * m


def _pad2d(a, rows, cols):
    return jnp.pad(a, ((0, rows - a.shape[0]), (0, cols - a.shape[1])))


def _num_tensorcores_per_chip():
    """Best-effort TC-per-chip sniff (v5e/v6e lite chips: 1; v4/v5p/v7x: 2)."""
    try:
        kind = jax.devices()[0].device_kind.lower()
    except Exception:
        return 2
    if "lite" in kind or "v5e" in kind or "v6e" in kind:
        return 1
    return 2


def _auto_tile(batch):
    """Pick the batch tile: one big tile on single-TC chips, >=2 balanced tiles on
    2-TC chips, capped at 2048 rows (keeps VMEM well under v5e's 16 MiB scoped default)."""
    bp = _round_up(max(batch, 128), 128)
    if _num_tensorcores_per_chip() >= 2:
        tile = _round_up((bp + 1) // 2, 128)     # >= 2 balanced tiles -> both TCs get work
    else:
        tile = bp                                 # single tile -> no per-step overhead
    return min(tile, 2048)


def _prepare_params(params, compute_dtype):
    """Pack/pad parameters.  Padding narrow feature dims to 128 is exact (padded
    weight/bias entries are 0 and ReLU(0)=0).  The attention identity's exact x2 is
    folded into wd1 (power of two -> exact in bf16 too)."""
    f32 = jnp.float32

    w2 = _pad2d(params["w2"], 128, 128)                 # (128, 64)  -> (128,128)
    w3 = _pad2d(params["w3"], 128, 128)                 # (64, E)    -> (128,128)
    wd1 = _pad2d(params["wd1"] * 2.0, 128, 128)         # (E, 64)*2  -> (128,128)
    wd2 = _pad2d(params["wd2"], 128, 128)               # (64, 128)  -> (128,128)
    wpack = jnp.stack([w2, w3, wd1, wd2]).astype(compute_dtype)      # (4,128,128) bf16

    bpack = jnp.concatenate([
        params["b1"],                                    # (1,128)
        _pad2d(params["b2"], 1, 128),
        _pad2d(params["b3"], 1, 128),
        _pad2d(params["bd1"], 1, 128),
        params["bd2"],
    ], axis=0).astype(f32)                               # (5,128) f32

    w1 = params["w1"].astype(compute_dtype)              # (in, 128) bf16
    wd3t = params["wd3"].T.astype(compute_dtype)         # (1, 128)  bf16
    bd3 = params["bd3"].astype(f32)                      # (1, 1)    f32
    return w1, wpack, wd3t, bpack, bd3


def autoencoder_forward(x, params, *, tile_b=None, compute_dtype=jnp.bfloat16):
    """x: (B, input_dim) float32.  params: dict of (in, out) weights, (1, out) biases.

    tile_b: rows per grid step (multiple of 128).  None -> auto: single tile on
    single-TC chips, >= 2 balanced tiles on 2-TC chips, capped at 2048 rows/tile
    (VMEM/step stays a few MiB, under every generation's scoped-VMEM default).
    """
    B, in_dim = x.shape
    if tile_b is None:
        tile_b = _auto_tile(B)
    assert tile_b % 128 == 0, "tile_b must be a multiple of 128 (lane-dense output)"

    w1, wpack, wd3t, bpack, bd3 = _prepare_params(params, compute_dtype)

    # Pad ragged batches up to a multiple of tile_b (padded rows are discarded).
    # x stays f32: no wrapper-side convert pass; the kernel casts on idle VPU slots.
    Bp = _round_up(B, tile_b)
    xb = jnp.pad(x, ((0, Bp - B), (0, 0))) if Bp != B else x
    num_tiles = Bp // tile_b

    in_specs = [
        pl.BlockSpec((tile_b, in_dim), lambda i: (i, 0)),      # x (f32)
        pl.BlockSpec(w1.shape, lambda i: (0, 0)),              # (in,128) bf16
        pl.BlockSpec(wpack.shape, lambda i: (0, 0, 0)),        # (4,128,128) bf16
        pl.BlockSpec(wd3t.shape, lambda i: (0, 0)),            # (1,128) bf16
        pl.BlockSpec(bpack.shape, lambda i: (0, 0)),           # (5,128) f32
        pl.BlockSpec(bd3.shape, lambda i: (0, 0)),             # (1,1) f32
    ]
    out_spec = pl.BlockSpec((1, tile_b), lambda i: (0, i))     # lane-dense row per tile

    out = pl.pallas_call(
        autoencoder_kernel,
        out_shape=jax.ShapeDtypeStruct((1, Bp), jnp.float32),
        grid_spec=pltpu.PrefetchScalarGridSpec(
            num_scalar_prefetch=0,
            grid=(num_tiles,),
            in_specs=in_specs,
            out_specs=out_spec,
        ),
        compiler_params=pltpu.CompilerParams(
            dimension_semantics=("parallel",)),
    )(xb, w1, wpack, wd3t, bpack, bd3)

    # (1, Bp) row -> (B, 1) column, matching the PyTorch module's output shape.
    return out.reshape(Bp, 1)[:B].astype(x.dtype)


# ----------------------------- reference & init ------------------------------


def init_params(key, input_dim, encoding_dim):
    """PyTorch-style uniform(-1/sqrt(fan_in), 1/sqrt(fan_in)) init.
    Weights stored as (in, out); biases as (1, out)."""
    dims = [
        ("w1", "b1", input_dim, 128),
        ("w2", "b2", 128, 64),
        ("w3", "b3", 64, encoding_dim),
        ("wa1", "ba1", encoding_dim, encoding_dim),   # attention (dead: exact identity)
        ("wa2", "ba2", encoding_dim, 1),
        ("wd1", "bd1", encoding_dim, 64),
        ("wd2", "bd2", 64, 128),
        ("wd3", "bd3", 128, 1),
    ]
    params = {}
    for (wname, bname, fin, fout) in dims:
        key, kw, kb = jax.random.split(key, 3)
        bound = 1.0 / (fin ** 0.5)
        params[wname] = jax.random.uniform(kw, (fin, fout), jnp.float32, -bound, bound)
        params[bname] = jax.random.uniform(kb, (1, fout), jnp.float32, -bound, bound)
    return params


def reference_forward(x, p, compute_dtype=jnp.bfloat16):
    """Faithful pure-JAX reference (full attention path, including the softmax over
    the size-1 axis) with the same bf16-operand / f32-accumulation quantization."""
    f32 = jnp.float32

    def dense(a, w, b):
        return jnp.dot(a.astype(compute_dtype), w.astype(compute_dtype),
                       preferred_element_type=f32) + b.astype(f32)

    relu = lambda v: jnp.maximum(v, 0.0)
    h = relu(dense(x, p["w1"], p["b1"]))
    h = relu(dense(h, p["w2"], p["b2"]))
    enc = relu(dense(h, p["w3"], p["b3"]))
    logits = dense(jnp.tanh(dense(enc, p["wa1"], p["ba1"])), p["wa2"], p["ba2"])
    attn = jax.nn.softmax(logits, axis=1)          # size-1 axis -> exactly 1.0
    res = enc + enc * attn
    d = relu(dense(res, p["wd1"], p["bd1"]))
    d = relu(dense(d, p["wd2"], p["bd2"]))
    return dense(d, p["wd3"], p["bd3"])


if __name__ == "__main__":
    INPUT_DIM = 32
    ENCODING_DIM = 16
    BATCH = 200         # deliberately ragged: exercises batch padding

    key = jax.random.PRNGKey(0)
    key, kx = jax.random.split(key)
    x = jax.random.normal(kx, (BATCH, INPUT_DIM), dtype=jnp.float32)
    params = init_params(key, INPUT_DIM, ENCODING_DIM)

    ref = reference_forward(x, params)

    # auto tile selection (single tile on v5e/v6e, 2 balanced tiles on 2-TC chips)
    out = jax.block_until_ready(autoencoder_forward(x, params))
    assert out.shape == (BATCH, 1), f"bad output shape {out.shape}"
    assert jnp.allclose(out, ref, atol=1e-2, rtol=1e-2), "mismatch vs reference (auto tile)"

    # forced multi-tile path (exercises non-trivial index maps / batch padding)
    out2 = jax.block_until_ready(autoencoder_forward(x, params, tile_b=128))
    assert jnp.allclose(out2, ref, atol=1e-2, rtol=1e-2), "mismatch vs reference (tile_b=128)"

    print("KERNEL_OK")
</pallas_src>

<mosaic_0001>
module attributes {stable_mosaic.version = 11 : i64} {
  func.func @autoencoder_kernel(%arg0: i32, %arg1: memref<128x32xf32, #tpu.memory_space<vmem>>, %arg2: memref<32x128xbf16, #tpu.memory_space<vmem>>, %arg3: memref<4x128x128xbf16, #tpu.memory_space<vmem>>, %arg4: memref<1x128xbf16, #tpu.memory_space<vmem>>, %arg5: memref<5x128xf32, #tpu.memory_space<vmem>>, %arg6: memref<1x1xf32, #tpu.memory_space<vmem>>, %arg7: memref<1x128xf32, #tpu.memory_space<vmem>>) attributes {dimension_semantics = [#tpu.dimension_semantics<parallel>], iteration_bounds = array<i64: 2>, scalar_prefetch = 0 : i64, scratch_operands = 0 : i64, tpu.core_type = #tpu.core_type<tc>, window_params = [{transform_indices = @transform_0, window_bounds = array<i64: 128, 32>}, {pipeline_mode = #tpu.pipeline_mode<synchronous>, transform_indices = @transform_1, window_bounds = array<i64: 32, 128>}, {pipeline_mode = #tpu.pipeline_mode<synchronous>, transform_indices = @transform_2, window_bounds = array<i64: 4, 128, 128>}, {pipeline_mode = #tpu.pipeline_mode<synchronous>, transform_indices = @transform_3, window_bounds = array<i64: 1, 128>}, {pipeline_mode = #tpu.pipeline_mode<synchronous>, transform_indices = @transform_4, window_bounds = array<i64: 5, 128>}, {pipeline_mode = #tpu.pipeline_mode<synchronous>, transform_indices = @transform_5, window_bounds = array<i64: 1, 1>}, {transform_indices = @transform_6, window_bounds = array<i64: 1, 128>}]} {
    %c0 = arith.constant 0 : index
    %c0_0 = arith.constant 0 : index
    %0 = vector.load %arg1[%c0, %c0_0] : memref<128x32xf32, #tpu.memory_space<vmem>>, vector<128x32xf32>
    %1 = arith.truncf %0 : vector<128x32xf32> to vector<128x32xbf16>
    %c0_1 = arith.constant 0 : index
    %c0_2 = arith.constant 0 : index
    %2 = vector.load %arg2[%c0_1, %c0_2] : memref<32x128xbf16, #tpu.memory_space<vmem>>, vector<32x128xbf16>
    %c0_3 = arith.constant 0 : index
    %c0_4 = arith.constant 0 : index
    %3 = vector.load %arg5[%c0_3, %c0_4] : memref<5x128xf32, #tpu.memory_space<vmem>>, vector<1x128xf32>
    %cst = arith.constant dense<0.000000e+00> : vector<128x128xf32>
    %4 = tpu.matmul %1, %2, %cst {dimension_numbers = #tpu.dot_dimension_numbers<[1], [0], [0], [1], [0, 0, 1, 1], [], []>} : vector<128x32xbf16>, vector<32x128xbf16>, vector<128x128xf32> -> vector<128x128xf32>
    %5 = vector.broadcast %3 : vector<1x128xf32> to vector<128x128xf32>
    %6 = arith.addf %4, %5 : vector<128x128xf32>
    %cst_5 = arith.constant 0.000000e+00 : f32
    %7 = vector.broadcast %cst_5 : f32 to vector<128x128xf32>
    %8 = arith.maximumf %6, %7 : vector<128x128xf32>
    %9 = arith.truncf %8 : vector<128x128xf32> to vector<128x128xbf16>
    %c0_6 = arith.constant 0 : index
    %c0_7 = arith.constant 0 : index
    %c0_8 = arith.constant 0 : index
    %10 = vector.load %arg3[%c0_6, %c0_7, %c0_8] : memref<4x128x128xbf16, #tpu.memory_space<vmem>>, vector<1x128x128xbf16>
    %11 = vector.shape_cast %10 : vector<1x128x128xbf16> to vector<128x128xbf16>
    %c1 = arith.constant 1 : index
    %c0_9 = arith.constant 0 : index
    %12 = vector.load %arg5[%c1, %c0_9] : memref<5x128xf32, #tpu.memory_space<vmem>>, vector<1x128xf32>
    %cst_10 = arith.constant dense<0.000000e+00> : vector<128x128xf32>
    %13 = tpu.matmul %9, %11, %cst_10 {dimension_numbers = #tpu.dot_dimension_numbers<[1], [0], [0], [1], [0, 0, 1, 1], [], []>} : vector<128x128xbf16>, vector<128x128xbf16>, vector<128x128xf32> -> vector<128x128xf32>
    %14 = vector.broadcast %12 : vector<1x128xf32> to vector<128x128xf32>
    %15 = arith.addf %13, %14 : vector<128x128xf32>
    %cst_11 = arith.constant 0.000000e+00 : f32
    %16 = vector.broadcast %cst_11 : f32 to vector<128x128xf32>
    %17 = arith.maximumf %15, %16 : vector<128x128xf32>
    %18 = arith.truncf %17 : vector<128x128xf32> to vector<128x128xbf16>
    %c1_12 = arith.constant 1 : index
    %c0_13 = arith.constant 0 : index
    %c0_14 = arith.constant 0 : index
    %19 = vector.load %arg3[%c1_12, %c0_13, %c0_14] : memref<4x128x128xbf16, #tpu.memory_space<vmem>>, vector<1x128x128xbf16>
    %20 = vector.shape_cast %19 : vector<1x128x128xbf16> to vector<128x128xbf16>
    %c2 = arith.constant 2 : index
    %c0_15 = arith.constant 0 : index
    %21 = vector.load %arg5[%c2, %c0_15] : memref<5x128xf32, #tpu.memory_space<vmem>>, vector<1x128xf32>
    %cst_16 = arith.constant dense<0.000000e+00> : vector<128x128xf32>
    %22 = tpu.matmul %18, %20, %cst_16 {dimension_numbers = #tpu.dot_dimension_numbers<[1], [0], [0], [1], [0, 0, 1, 1], [], []>} : vector<128x128xbf16>, vector<128x128xbf16>, vector<128x128xf32> -> vector<128x128xf32>
    %23 = vector.broadcast %21 : vector<1x128xf32> to vector<128x128xf32>
    %24 = arith.addf %22, %23 : vector<128x128xf32>
    %cst_17 = arith.constant 0.000000e+00 : f32
    %25 = vector.broadcast %cst_17 : f32 to vector<128x128xf32>
    %26 = arith.maximumf %24, %25 : vector<128x128xf32>
    %27 = arith.truncf %26 : vector<128x128xf32> to vector<128x128xbf16>
    %c2_18 = arith.constant 2 : index
    %c0_19 = arith.constant 0 : index
    %c0_20 = arith.constant 0 : index
    %28 = vector.load %arg3[%c2_18, %c0_19, %c0_20] : memref<4x128x128xbf16, #tpu.memory_space<vmem>>, vector<1x128x128xbf16>
    %29 = vector.shape_cast %28 : vector<1x128x128xbf16> to vector<128x128xbf16>
    %c3 = arith.constant 3 : index
    %c0_21 = arith.constant 0 : index
    %30 = vector.load %arg5[%c3, %c0_21] : memref<5x128xf32, #tpu.memory_space<vmem>>, vector<1x128xf32>
    %cst_22 = arith.constant dense<0.000000e+00> : vector<128x128xf32>
    %31 = tpu.matmul %27, %29, %cst_22 {dimension_numbers = #tpu.dot_dimension_numbers<[1], [0], [0], [1], [0, 0, 1, 1], [], []>} : vector<128x128xbf16>, vector<128x128xbf16>, vector<128x128xf32> -> vector<128x128xf32>
    %32 = vector.broadcast %30 : vector<1x128xf32> to vector<128x128xf32>
    %33 = arith.addf %31, %32 : vector<128x128xf32>
    %cst_23 = arith.constant 0.000000e+00 : f32
    %34 = vector.broadcast %cst_23 : f32 to vector<128x128xf32>
    %35 = arith.maximumf %33, %34 : vector<128x128xf32>
    %36 = arith.truncf %35 : vector<128x128xf32> to vector<128x128xbf16>
    %c3_24 = arith.constant 3 : index
    %c0_25 = arith.constant 0 : index
    %c0_26 = arith.constant 0 : index
    %37 = vector.load %arg3[%c3_24, %c0_25, %c0_26] : memref<4x128x128xbf16, #tpu.memory_space<vmem>>, vector<1x128x128xbf16>
    %38 = vector.shape_cast %37 : vector<1x128x128xbf16> to vector<128x128xbf16>
    %c4 = arith.constant 4 : index
    %c0_27 = arith.constant 0 : index
    %39 = vector.load %arg5[%c4, %c0_27] : memref<5x128xf32, #tpu.memory_space<vmem>>, vector<1x128xf32>
    %cst_28 = arith.constant dense<0.000000e+00> : vector<128x128xf32>
    %40 = tpu.matmul %36, %38, %cst_28 {dimension_numbers = #tpu.dot_dimension_numbers<[1], [0], [0], [1], [0, 0, 1, 1], [], []>} : vector<128x128xbf16>, vector<128x128xbf16>, vector<128x128xf32> -> vector<128x128xf32>
    %41 = vector.broadcast %39 : vector<1x128xf32> to vector<128x128xf32>
    %42 = arith.addf %40, %41 : vector<128x128xf32>
    %cst_29 = arith.constant 0.000000e+00 : f32
    %43 = vector.broadcast %cst_29 : f32 to vector<128x128xf32>
    %44 = arith.maximumf %42, %43 : vector<128x128xf32>
    %45 = arith.truncf %44 : vector<128x128xf32> to vector<128x128xbf16>
    %c0_30 = arith.constant 0 : index
    %c0_31 = arith.constant 0 : index
    %46 = vector.load %arg4[%c0_30, %c0_31] : memref<1x128xbf16, #tpu.memory_space<vmem>>, vector<1x128xbf16>
    %cst_32 = arith.constant dense<0.000000e+00> : vector<1x128xf32>
    %47 = tpu.matmul %46, %45, %cst_32 {dimension_numbers = #tpu.dot_dimension_numbers<[1], [1], [0], [0], [0, 0, 1, 0], [], []>} : vector<1x128xbf16>, vector<128x128xbf16>, vector<1x128xf32> -> vector<1x128xf32>
    %c0_33 = arith.constant 0 : index
    %c0_34 = arith.constant 0 : index
    %48 = vector.load %arg6[%c0_33, %c0_34] : memref<1x1xf32, #tpu.memory_space<vmem>>, vector<1x1xf32>
    %49 = vector.broadcast %48 : vector<1x1xf32> to vector<1x128xf32>
    %50 = arith.addf %47, %49 : vector<1x128xf32>
    %c0_35 = arith.constant 0 : index
    %c0_36 = arith.constant 0 : index
    %51 = vector.load %arg7[%c0_35, %c0_36] : memref<1x128xf32, #tpu.memory_space<vmem>>, vector<1x128xf32>
    tpu.vector_store %arg7[%c0_35, %c0_36], %50 {strides = array<i32>} : memref<1x128xf32, #tpu.memory_space<vmem>>, vector<1x128xf32>,
    return
  }
  func.func @transform_0(%arg0: i32) -> (i32, i32) {
    %c0_i32 = arith.constant 0 : i32
    %c0_i32_0 = arith.constant 0 : i32
    return %arg0, %c0_i32 : i32, i32
  }
  func.func @transform_1(%arg0: i32) -> (i32, i32) {
    %c0_i32 = arith.constant 0 : i32
    %c0_i32_0 = arith.constant 0 : i32
    %c0_i32_1 = arith.constant 0 : i32
    return %c0_i32, %c0_i32_0 : i32, i32
  }
  func.func @transform_2(%arg0: i32) -> (i32, i32, i32) {
    %c0_i32 = arith.constant 0 : i32
    %c0_i32_0 = arith.constant 0 : i32
    %c0_i32_1 = arith.constant 0 : i32
    %c0_i32_2 = arith.constant 0 : i32
    return %c0_i32, %c0_i32_0, %c0_i32_1 : i32, i32, i32
  }
  func.func @transform_3(%arg0: i32) -> (i32, i32) {
    %c0_i32 = arith.constant 0 : i32
    %c0_i32_0 = arith.constant 0 : i32
    %c0_i32_1 = arith.constant 0 : i32
    return %c0_i32, %c0_i32_0 : i32, i32
  }
  func.func @transform_4(%arg0: i32) -> (i32, i32) {
    %c0_i32 = arith.constant 0 : i32
    %c0_i32_0 = arith.constant 0 : i32
    %c0_i32_1 = arith.constant 0 : i32
    return %c0_i32, %c0_i32_0 : i32, i32
  }
  func.func @transform_5(%arg0: i32) -> (i32, i32) {
    %c0_i32 = arith.constant 0 : i32
    %c0_i32_0 = arith.constant 0 : i32
    %c0_i32_1 = arith.constant 0 : i32
    return %c0_i32, %c0_i32_0 : i32, i32
  }
  func.func @transform_6(%arg0: i32) -> (i32, i32) {
    %c0_i32 = arith.constant 0 : i32
    %c0_i32_0 = arith.constant 0 : i32
    return %c0_i32, %arg0 : i32, i32
  }
}

</mosaic_0001>

<llo_original>
// kernel: tpu_custom_call.1
$region0: #{tpu_custom_call.1}
  #allocation0 [shape = 'u32[]', space=smem, size = 0x4, offset = 0x4, fixed_abs, tag = 'smem constant byte address 0x4 - core index']
  #allocation1 [shape = 'u32[72,128]{1,0:T(1,128)}', space=vmem, size = 0x9000, scoped, tag = 'internal scratch']
  #allocation2 [shape = 'f32[1,1]{1,0:T(1,128)S(1)}', space=vmem, size = 0x200, scoped, tag = 'scoped memory for tpu_custom_call.1']
  %s0 = inlined_call_operand.vmem [shape: f32[256,32], index: 0, kind: input, shape index: {}]
  %s1 = inlined_call_operand.vmem [shape: bf16[32,128], index: 1, kind: input, shape index: {}]
  %s2 = inlined_call_operand.vmem [shape: bf16[4,128,128], index: 2, kind: input, shape index: {}]
  %s3 = inlined_call_operand.vmem [shape: bf16[1,128], index: 3, kind: input, shape index: {}]
  %s4 = inlined_call_operand.vmem [shape: f32[5,128], index: 4, kind: input, shape index: {}]
  %s5 = inlined_call_operand.<no memory space> [shape: f32[1,1], index: 5, kind: input, shape index: {}]
  %s6 = inlined_call_operand.hbm [shape: f32[1,256], index: 6, kind: output, shape index: {}]
  %s7 = sld [smem:[#allocation0]]
  $region57: #{tpu_custom_call.1} parent=0
    _
  %s9 = ssub.s32 1, %s7
  %s10 = scalar_select 0, %s9, %s7
  %v11 = vstv %s5
  %12 = vst [vmem:[#allocation2] sm:$0x1] %v11
  $region1: #{tpu_custom_call.1} parent=0
    #allocation3 [shape = 'u8[1024]{0}', space=vmem, size = 0x400, scoped, tag = 'output window, operand 0']
    #allocation4 [shape = 's32[2]{0}', space=sflag, size = 0x8, scoped, tag = 'scoped memory for tpu_custom_call.1']
    %13 = vsyncpa [#allocation4], 0
    %s14 = scalar_lea.sflag [#allocation4], 1
    %15 = vsyncpa %s14, 0
    loop: start=0, step=1, limit=4
    $region2: #{tpu_custom_call.1} parent=1 // loop_pre_header
      _
    $region3: #{tpu_custom_call.1} parent=1 // loop_header
      %s17 = sphi 0, %s21
      %p18 = scmp.ge.s32.totalorder %s17, 4
      %s27 = sphi 0, %s29
      %s30 = sphi 0, %s27
      %s31 = sphi 0, %s30
      %s47 = sphi 0, %s31
      %s51 = sphi 0, %s51
      %s53 = sphi 0, %s51
      %s54 = sphi 0, %s53
      %s68 = sphi 0, %s54
      %s72 = sphi 0, %s72
      %s74 = sphi 0, %s72
      %s75 = sphi 0, %s74
      %s89 = sphi 0, %s75
      %s93 = sphi 0, %s93
      %s95 = sphi 0, %s93
      %s96 = sphi 0, %s95
      %s110 = sphi 0, %s96
      %s114 = sphi 0, %s114
      %s116 = sphi 0, %s114
      %s117 = sphi 0, %s116
      %s131 = sphi 0, %s117
      %s135 = sphi 0, %s135
      %s137 = sphi 0, %s135
      %s138 = sphi 0, %s137
      %s152 = sphi 0, %s138
      %s158 = sphi 0, %s160
      %s161 = sphi 0, %s158
      %s162 = sphi 0, %s161
      %s178 = sphi 0, %s162
    $region4: #{tpu_custom_call.1} parent=1 // loop_header_branch
      %20 = sbr.rel (%p18) target = $region8
    $region5: #{tpu_custom_call.1} parent=1 // loop_body
      %s22 = ssub.s32 %s17, 1
      %s23 = ssub.s32 %s17, 2
      %s24 = sadd.s32 %s17, 1
      %s25 = ssub.s32 %s17, %s24
      %p26 = scmp.eq.s32.totalorder %s25, 0
      %s28 = sadd.s32 %s27, 1
      %s29 = scalar_select %p26, %s27, %s28
      %p32 = pneg %p26
      %p33 = scmp.eq.s32.totalorder %s17, 1
      %p34 = por %p32, %p33
      %p35 = scmp.ne.s32.totalorder %s27, %s30
      %p36 = scmp.eq.s32.totalorder %s17, 0
      %p37 = por %p35, %p36
      %p38 = scmp.ne.s32.totalorder %s27, %s30
      %p39 = scmp.eq.s32.totalorder %s22, 1
      %p40 = por %p38, %p39
      %p41 = scmp.ne.s32.totalorder %s30, %s31
      %p42 = scmp.eq.s32.totalorder %s22, 0
      %p43 = por %p41, %p42
      %p44 = scmp.ne.s32.totalorder %s30, %s31
      %p45 = scmp.eq.s32.totalorder %s23, 1
      %p46 = por %p44, %p45
      %p48 = scmp.ne.s32.totalorder %s31, %s47
      %p49 = scmp.eq.s32.totalorder %s23, 0
      %p50 = por %p48, %p49
      %s52 = sadd.s32 %s51, 1
      %p55 = scmp.eq.s32.totalorder %s17, 1
      %p56 = scmp.ne.s32.totalorder %s51, %s53
      %p57 = scmp.eq.s32.totalorder %s17, 0
      %p58 = por %p56, %p57
      %p59 = scmp.ne.s32.totalorder %s51, %s53
      %p60 = scmp.eq.s32.totalorder %s22, 1
      %p61 = por %p59, %p60
      %p62 = scmp.ne.s32.totalorder %s53, %s54
      %p63 = scmp.eq.s32.totalorder %s22, 0
      %p64 = por %p62, %p63
      %p65 = scmp.ne.s32.totalorder %s53, %s54
      %p66 = scmp.eq.s32.totalorder %s23, 1
      %p67 = por %p65, %p66
      %p69 = scmp.ne.s32.totalorder %s54, %s68
      %p70 = scmp.eq.s32.totalorder %s23, 0
      %p71 = por %p69, %p70
      %s73 = sadd.s32 %s72, 1
      %p76 = scmp.eq.s32.totalorder %s17, 1
      %p77 = scmp.ne.s32.totalorder %s72, %s74
      %p78 = scmp.eq.s32.totalorder %s17, 0
      %p79 = por %p77, %p78
      %p80 = scmp.ne.s32.totalorder %s72, %s74
      %p81 = scmp.eq.s32.totalorder %s22, 1
      %p82 = por %p80, %p81
      %p83 = scmp.ne.s32.totalorder %s74, %s75
      %p84 = scmp.eq.s32.totalorder %s22, 0
      %p85 = por %p83, %p84
      %p86 = scmp.ne.s32.totalorder %s74, %s75
      %p87 = scmp.eq.s32.totalorder %s23, 1
      %p88 = por %p86, %p87
      %p90 = scmp.ne.s32.totalorder %s75, %s89
      %p91 = scmp.eq.s32.totalorder %s23, 0
      %p92 = por %p90, %p91
      %s94 = sadd.s32 %s93, 1
      %p97 = scmp.eq.s32.totalorder %s17, 1
      %p98 = scmp.ne.s32.totalorder %s93, %s95
      %p99 = scmp.eq.s32.totalorder %s17, 0
      %p100 = por %p98, %p99
      %p101 = scmp.ne.s32.totalorder %s93, %s95
      %p102 = scmp.eq.s32.totalorder %s22, 1
      %p103 = por %p101, %p102
      %p104 = scmp.ne.s32.totalorder %s95, %s96
      %p105 = scmp.eq.s32.totalorder %s22, 0
      %p106 = por %p104, %p105
      %p107 = scmp.ne.s32.totalorder %s95, %s96
      %p108 = scmp.eq.s32.totalorder %s23, 1
      %p109 = por %p107, %p108
      %p111 = scmp.ne.s32.totalorder %s96, %s110
      %p112 = scmp.eq.s32.totalorder %s23, 0
      %p113 = por %p111, %p112
      %s115 = sadd.s32 %s114, 1
      %p118 = scmp.eq.s32.totalorder %s17, 1
      %p119 = scmp.ne.s32.totalorder %s114, %s116
      %p120 = scmp.eq.s32.totalorder %s17, 0
      %p121 = por %p119, %p120
      %p122 = scmp.ne.s32.totalorder %s114, %s116
      %p123 = scmp.eq.s32.totalorder %s22, 1
      %p124 = por %p122, %p123
      %p125 = scmp.ne.s32.totalorder %s116, %s117
      %p126 = scmp.eq.s32.totalorder %s22, 0
      %p127 = por %p125, %p126
      %p128 = scmp.ne.s32.totalorder %s116, %s117
      %p129 = scmp.eq.s32.totalorder %s23, 1
      %p130 = por %p128, %p129
      %p132 = scmp.ne.s32.totalorder %s117, %s131
      %p133 = scmp.eq.s32.totalorder %s23, 0
      %p134 = por %p132, %p133
      %s136 = sadd.s32 %s135, 1
      %p139 = scmp.eq.s32.totalorder %s17, 1
      %p140 = scmp.ne.s32.totalorder %s135, %s137
      %p141 = scmp.eq.s32.totalorder %s17, 0
      %p142 = por %p140, %p141
      %p143 = scmp.ne.s32.totalorder %s135, %s137
      %p144 = scmp.eq.s32.totalorder %s22, 1
      %p145 = por %p143, %p144
      %p146 = scmp.ne.s32.totalorder %s137, %s138
      %p147 = scmp.eq.s32.totalorder %s22, 0
      %p148 = por %p146, %p147
      %p149 = scmp.ne.s32.totalorder %s137, %s138
      %p150 = scmp.eq.s32.totalorder %s23, 1
      %p151 = por %p149, %p150
      %p153 = scmp.ne.s32.totalorder %s138, %s152
      %p154 = scmp.eq.s32.totalorder %s23, 0
      %p155 = por %p153, %p154
      %s156 = ssub.s32 %s17, %s24
      %p157 = scmp.eq.s32.totalorder %s156, 0
      %s159 = sadd.s32 %s158, 1
      %s160 = scalar_select %p157, %s158, %s159
      %p163 = pneg %p157
      %p164 = scmp.eq.s32.totalorder %s17, 1
      %p165 = por %p163, %p164
      %p166 = scmp.ne.s32.totalorder %s158, %s161
      %p167 = scmp.eq.s32.totalorder %s17, 0
      %p168 = por %p166, %p167
      %p169 = scmp.ne.s32.totalorder %s158, %s161
      %p170 = scmp.eq.s32.totalorder %s22, 1
      %p171 = por %p169, %p170
      %p172 = scmp.ne.s32.totalorder %s161, %s162
      %p173 = scmp.eq.s32.totalorder %s22, 0
      %p174 = por %p172, %p173
      %p175 = scmp.ne.s32.totalorder %s161, %s162
      %p176 = scmp.eq.s32.totalorder %s23, 1
      %p177 = por %p175, %p176
      %p179 = scmp.ne.s32.totalorder %s162, %s178
      %p180 = scmp.eq.s32.totalorder %s23, 0
      %p181 = por %p179, %p180
      %p182 = scmp.le.s32.totalorder 1, %s17
      %p183 = scmp.lt.s32.totalorder %s17, 3
      %p184 = pnand %p182, %p183
      %p185 = pneg %p184
      // Predicated region
      $region9: #{tpu_custom_call.1} parent=5 // pred_check
        _
      $region10: #{tpu_custom_call.1} parent=5 // pred_check_branch
        %187 = sbr.rel (%p184) target = $region12
      $region11: #{tpu_custom_call.1} parent=5 // pred_region
        %s188 = ssub.s32 %s17, 1
        // Predicated region
        $region13: #{tpu_custom_call.1} parent=11 // pred_check
          %p189 = pneg %p64
        $region14: #{tpu_custom_call.1} parent=11 // pred_check_branch
          %191 = sbr.rel (%p189) target = $region16
        $region15: #{tpu_custom_call.1} parent=11 // pred_region
          _
        $region16: #{tpu_custom_call.1} parent=11 // pred_fallthru
          _
        // Predicated region
        $region17: #{tpu_custom_call.1} parent=11 // pred_check
          %p192 = pneg %p85
        $region18: #{tpu_custom_call.1} parent=11 // pred_check_branch
          %194 = sbr.rel (%p192) target = $region20
        $region19: #{tpu_custom_call.1} parent=11 // pred_region
          _
        $region20: #{tpu_custom_call.1} parent=11 // pred_fallthru
          _
        // Predicated region
        $region21: #{tpu_custom_call.1} parent=11 // pred_check
          %p195 = pneg %p106
        $region22: #{tpu_custom_call.1} parent=11 // pred_check_branch
          %197 = sbr.rel (%p195) target = $region24
        $region23: #{tpu_custom_call.1} parent=11 // pred_region
          _
        $region24: #{tpu_custom_call.1} parent=11 // pred_fallthru
          _
        // Predicated region
        $region25: #{tpu_custom_call.1} parent=11 // pred_check
          %p198 = pneg %p127
        $region26: #{tpu_custom_call.1} parent=11 // pred_check_branch
          %200 = sbr.rel (%p198) target = $region28
        $region27: #{tpu_custom_call.1} parent=11 // pred_region
          _
        $region28: #{tpu_custom_call.1} parent=11 // pred_fallthru
          _
        // Predicated region
        $region29: #{tpu_custom_call.1} parent=11 // pred_check
          %p201 = pneg %p148
        $region30: #{tpu_custom_call.1} parent=11 // pred_check_branch
          %203 = sbr.rel (%p201) target = $region32
        $region31: #{tpu_custom_call.1} parent=11 // pred_region
          _
        $region32: #{tpu_custom_call.1} parent=11 // pred_fallthru
          _
      $region12: #{tpu_custom_call.1} parent=5 // pred_fallthru
        _
      %p204 = scmp.lt.s32.totalorder %s17, 2
      // Predicated region
      $region33: #{tpu_custom_call.1} parent=5 // pred_check
        %p205 = pneg %p204
      $region34: #{tpu_custom_call.1} parent=5 // pred_check_branch
        %207 = sbr.rel (%p205) target = $region36
      $region35: #{tpu_custom_call.1} parent=5 // pred_region
        // Predicated region
        $region37: #{tpu_custom_call.1} parent=35 // pred_check
          %p208 = pneg %p37
        $region38: #{tpu_custom_call.1} parent=35 // pred_check_branch
          %210 = sbr.rel (%p208) target = $region40
        $region39: #{tpu_custom_call.1} parent=35 // pred_region
          %s211 = smul.u32 16, %s17
          %p212 = scmp.lt.s32.totalorder %s211, 31
          %s213 = scalar_select %p212, %s211, 31
          %s214 = smul.addr %s213, 8
          %s215 = scalar_lea.vmem %s0, %s214
          %s216 = smul.u32 16, %s17
        $region40: #{tpu_custom_call.1} parent=35 // pred_fallthru
          _
      $region36: #{tpu_custom_call.1} parent=5 // pred_fallthru
        _
      %p217 = scmp.le.s32.totalorder 1, %s17
      %p218 = scmp.lt.s32.totalorder %s17, 3
      %p219 = pnand %p217, %p218
      %p220 = pneg %p219
      // Predicated region
      $region41: #{tpu_custom_call.1} parent=5 // pred_check
        _
      $region42: #{tpu_custom_call.1} parent=5 // pred_check_branch
        %222 = sbr.rel (%p219) target = $region44
      $region43: #{tpu_custom_call.1} parent=5 // pred_region
        %s223 = ssub.s32 %s17, 1
        %s224 = smul.u32 16, %s22
        %p225 = scmp.lt.s32.totalorder %s224, 31
        %s226 = scalar_select %p225, %s224, 31
        %s227 = smul.addr %s226, 8
        %s228 = scalar_lea.vmem %s0, %s227
        %p229 = pneg %p43
        %p230 = pneg %p40
        %p231 = pneg %p64
        %p232 = pneg %p61
        %p233 = pneg %p85
        %p234 = pneg %p82
        %p235 = pneg %p106
        %p236 = pneg %p103
        %p237 = pneg %p127
        %p238 = pneg %p124
        %p239 = pneg %p148
        %p240 = pneg %p145
        %p241 = pneg %p174
        %p242 = pneg %p171
        %s243 = sand.u32 %s161, 1
        %s244 = scalar_lea.sflag [#allocation4], %s243
        %s245 = sand.u32 %s161, 1
        %s246 = scalar_lea.vmem [#allocation3], %s245
        %s247 = smul.u32 16, %s22
        %p248 = scmp.lt.s32.totalorder %s247, 31
        %s249 = scalar_select %p248, %s247, 31
        %s250 = smul.addr %s249, 8
        %s251 = scalar_lea.vmem %s0, %s250
        %s252 = smul.u32 16, %s22
        %v254 = vld [vmem:[%s251] sm:$0xff]
        %v255 = vld [vmem:[%s251 + $0x8] sm:$0xff]
        %v256 = vld [vmem:[%s251 + $0x10] sm:$0xff]
        %v257 = vld [vmem:[%s251 + $0x18] sm:$0xff]
        %v258 = vld [vmem:[%s251 + $0x20] sm:$0xff]
        %v259 = vld [vmem:[%s251 + $0x28] sm:$0xff]
        %v260 = vld [vmem:[%s251 + $0x30] sm:$0xff]
        %v261 = vld [vmem:[%s251 + $0x38] sm:$0xff]
        %v262 = vld [vmem:[%s251 + $0x40] sm:$0xff]
        %v263 = vld [vmem:[%s251 + $0x48] sm:$0xff]
        %v264 = vld [vmem:[%s251 + $0x50] sm:$0xff]
        %v265 = vld [vmem:[%s251 + $0x58] sm:$0xff]
        %v266 = vld [vmem:[%s251 + $0x60] sm:$0xff]
        %v267 = vld [vmem:[%s251 + $0x68] sm:$0xff]
        %v268 = vld [vmem:[%s251 + $0x70] sm:$0xff]
        %v269 = vld [vmem:[%s251 + $0x78] sm:$0xff]
        %v270 = vpack.c.bf16 %v255, %v254
        %v271 = vpack.c.bf16 %v257, %v256
        %v272 = vpack.c.bf16 %v259, %v258
        %v273 = vpack.c.bf16 %v261, %v260
        %v274 = vpack.c.bf16 %v263, %v262
        %v275 = vpack.c.bf16 %v265, %v264
        %v276 = vpack.c.bf16 %v267, %v266
        %v277 = vpack.c.bf16 %v269, %v268
        %v278 = vld [vmem:[%s1] sm:$0xf]
        %v279 = vld [vmem:[%s1 + $0x4] sm:$0xf]
        %v280 = vld [vmem:[%s1 + $0x8] sm:$0xf]
        %v281 = vld [vmem:[%s1 + $0xc] sm:$0xf]
        %v282 = vld [vmem:[%s4] sm:$0x1]
        %v283 = vperm.slane %v282, 0
        %v288 = vunpack.c.l.b16 %v278
        %v289 = vunpack.c.l.b16 %v279
        %v290 = vunpack.c.l.b16 %v280
        %v291 = vunpack.c.l.b16 %v281
        %v292 = vpack.c.b16 %v289, %v288
        %v293 = vpack.c.b16 %v291, %v290
        %vm296 = vcmask 261120
        %v298 = vsel %vm296, %v270, 0
        %v301 = vsel %vm296, %v271, 0
        %v304 = vsel %vm296, %v272, 0
        %v307 = vsel %vm296, %v273, 0
        %v310 = vsel %vm296, %v274, 0
        %v313 = vsel %vm296, %v275, 0
        %v316 = vsel %vm296, %v276, 0
        %v319 = vsel %vm296, %v277, 0
        %321 = vmatpush.bf16.msra.mxu0 0
        %322 = vmatpush.bf16.msra.mxu0 0
        %323 = vmatpush.bf16.msra.mxu0 0
        %324 = vmatpush.bf16.msra.mxu0 0
        %325 = vmatpush.bf16.msra.mxu0 0
        %326 = vmatpush.bf16.msra.mxu0 0
        %327 = vmatpush.bf16.msra.mxu0 %v293
        %328 = vmatpush.bf16.msra.mxu0 %v292
        %329 = vmatmul.bf16.gmra.mxu0 %v298
        %v330 = vpop.f32.mrf.mxu0
        %v331 = vadd.f32 %v283, %v330
        %v332 = vpop.f32.mrf.mxu0
        %v333 = vadd.f32 %v283, %v332
        %334 = vmatmul.bf16.gmra.mxu0 %v301
        %v335 = vpop.f32.mrf.mxu0
        %v336 = vadd.f32 %v283, %v335
        %v337 = vpop.f32.mrf.mxu0
        %v338 = vadd.f32 %v283, %v337
        %339 = vmatmul.bf16.gmra.mxu0 %v304
        %v340 = vpop.f32.mrf.mxu0
        %v341 = vadd.f32 %v283, %v340
        %v342 = vpop.f32.mrf.mxu0
        %v343 = vadd.f32 %v283, %v342
        %344 = vmatmul.bf16.gmra.mxu0 %v307
        %v345 = vpop.f32.mrf.mxu0
        %v346 = vadd.f32 %v283, %v345
        %v347 = vpop.f32.mrf.mxu0
        %v348 = vadd.f32 %v283, %v347
        %349 = vmatmul.bf16.gmra.mxu0 %v310
        %v350 = vpop.f32.mrf.mxu0
        %v351 = vadd.f32 %v283, %v350
        %v352 = vpop.f32.mrf.mxu0
        %v353 = vadd.f32 %v283, %v352
        %354 = vmatmul.bf16.gmra.mxu0 %v313
        %v355 = vpop.f32.mrf.mxu0
        %v356 = vadd.f32 %v283, %v355
        %v357 = vpop.f32.mrf.mxu0
        %v358 = vadd.f32 %v283, %v357
        %359 = vmatmul.bf16.gmra.mxu0 %v316
        %v360 = vpop.f32.mrf.mxu0
        %v361 = vadd.f32 %v283, %v360
        %v362 = vpop.f32.mrf.mxu0
        %v363 = vadd.f32 %v283, %v362
        %364 = vmatmul.bf16.gmra.mxu0 %v319
        %v365 = vpop.f32.mrf.mxu0
        %v366 = vadd.f32 %v283, %v365
        %v367 = vpop.f32.mrf.mxu0
        %v368 = vadd.f32 %v283, %v367
        %369 = vdwg.mxu0
        %v370 = vmax.f32 %v331, 0.0
        %v371 = vmax.f32 %v333, 0.0
        %v372 = vmax.f32 %v336, 0.0
        %v373 = vmax.f32 %v338, 0.0
        %v374 = vmax.f32 %v341, 0.0
        %v375 = vmax.f32 %v343, 0.0
        %v376 = vmax.f32 %v346, 0.0
        %v377 = vmax.f32 %v348, 0.0
        %v378 = vmax.f32 %v351, 0.0
        %v379 = vmax.f32 %v353, 0.0
        %v380 = vmax.f32 %v356, 0.0
        %v381 = vmax.f32 %v358, 0.0
        %v382 = vmax.f32 %v361, 0.0
        %v383 = vmax.f32 %v363, 0.0
        %v384 = vmax.f32 %v366, 0.0
        %v385 = vmax.f32 %v368, 0.0
        %v386 = vpack.c.bf16 %v371, %v370
        %v387 = vpack.c.bf16 %v373, %v372
        %v388 = vpack.c.bf16 %v375, %v374
        %v389 = vpack.c.bf16 %v377, %v376
        %v390 = vpack.c.bf16 %v379, %v378
        %v391 = vpack.c.bf16 %v381, %v380
        %v392 = vpack.c.bf16 %v383, %v382
        %v393 = vpack.c.bf16 %v385, %v384
        %v394 = vld [vmem:[%s2] sm:$0xf]
        %v395 = vld [vmem:[%s2 + $0x4] sm:$0xf]
        %v396 = vld [vmem:[%s2 + $0x8] sm:$0xf]
        %v397 = vld [vmem:[%s2 + $0xc] sm:$0xf]
        %v398 = vld [vmem:[%s2 + $0x10] sm:$0xf]
        %v399 = vld [vmem:[%s2 + $0x14] sm:$0xf]
        %v400 = vld [vmem:[%s2 + $0x18] sm:$0xf]
        %v401 = vld [vmem:[%s2 + $0x1c] sm:$0xf]
        %v402 = vld [vmem:[%s2 + $0x20] sm:$0xf]
        %v403 = vld [vmem:[%s2 + $0x24] sm:$0xf]
        %v404 = vld [vmem:[%s2 + $0x28] sm:$0xf]
        %v405 = vld [vmem:[%s2 + $0x2c] sm:$0xf]
        %v406 = vld [vmem:[%s2 + $0x30] sm:$0xf]
        %v407 = vld [vmem:[%s2 + $0x34] sm:$0xf]
        %v408 = vld [vmem:[%s2 + $0x38] sm:$0xf]
        %v409 = vld [vmem:[%s2 + $0x3c] sm:$0xf]
        %v410 = vld [vmem:[%s4 + $0x1] sm:$0x1]
        %v411 = vperm.slane %v410, 0
        %v428 = vunpack.c.l.b16 %v394
        %v429 = vunpack.c.l.b16 %v395
        %v430 = vunpack.c.l.b16 %v396
        %v431 = vunpack.c.l.b16 %v397
        %v432 = vunpack.c.l.b16 %v398
        %v433 = vunpack.c.l.b16 %v399
        %v434 = vunpack.c.l.b16 %v400
        %v435 = vunpack.c.l.b16 %v401
        %v436 = vunpack.c.l.b16 %v402
        %v437 = vunpack.c.l.b16 %v403
        %v438 = vunpack.c.l.b16 %v404
        %v439 = vunpack.c.l.b16 %v405
        %v440 = vunpack.c.l.b16 %v406
        %v441 = vunpack.c.l.b16 %v407
        %v442 = vunpack.c.l.b16 %v408
        %v443 = vunpack.c.l.b16 %v409
        %v444 = vpack.c.b16 %v429, %v428
        %v445 = vpack.c.b16 %v431, %v430
        %v446 = vpack.c.b16 %v433, %v432
        %v447 = vpack.c.b16 %v435, %v434
        %v448 = vpack.c.b16 %v437, %v436
        %v449 = vpack.c.b16 %v439, %v438
        %v450 = vpack.c.b16 %v441, %v440
        %v451 = vpack.c.b16 %v443, %v442
        %460 = vmatpush.bf16.msra.mxu0 %v451
        %461 = vmatpush.bf16.msra.mxu0 %v450
        %462 = vmatpush.bf16.msra.mxu0 %v449
        %463 = vmatpush.bf16.msra.mxu0 %v448
        %464 = vmatpush.bf16.msra.mxu0 %v447
        %465 = vmatpush.bf16.msra.mxu0 %v446
        %466 = vmatpush.bf16.msra.mxu0 %v445
        %467 = vmatpush.bf16.msra.mxu0 %v444
        %468 = vmatmul.bf16.gmra.mxu0 %v386
        %v469 = vpop.f32.mrf.mxu0
        %v470 = vadd.f32 %v411, %v469
        %v471 = vpop.f32.mrf.mxu0
        %v472 = vadd.f32 %v411, %v471
        %473 = vmatmul.bf16.gmra.mxu0 %v387
        %v474 = vpop.f32.mrf.mxu0
        %v475 = vadd.f32 %v411, %v474
        %v476 = vpop.f32.mrf.mxu0
        %v477 = vadd.f32 %v411, %v476
        %478 = vmatmul.bf16.gmra.mxu0 %v388
        %v479 = vpop.f32.mrf.mxu0
        %v480 = vadd.f32 %v411, %v479
        %v481 = vpop.f32.mrf.mxu0
        %v482 = vadd.f32 %v411, %v481
        %483 = vmatmul.bf16.gmra.mxu0 %v389
        %v484 = vpop.f32.mrf.mxu0
        %v485 = vadd.f32 %v411, %v484
        %v486 = vpop.f32.mrf.mxu0
        %v487 = vadd.f32 %v411, %v486
        %488 = vmatmul.bf16.gmra.mxu0 %v390
        %v489 = vpop.f32.mrf.mxu0
        %v490 = vadd.f32 %v411, %v489
        %v491 = vpop.f32.mrf.mxu0
        %v492 = vadd.f32 %v411, %v491
        %493 = vmatmul.bf16.gmra.mxu0 %v391
        %v494 = vpop.f32.mrf.mxu0
        %v495 = vadd.f32 %v411, %v494
        %v496 = vpop.f32.mrf.mxu0
        %v497 = vadd.f32 %v411, %v496
        %498 = vmatmul.bf16.gmra.mxu0 %v392
        %v499 = vpop.f32.mrf.mxu0
        %v500 = vadd.f32 %v411, %v499
        %v501 = vpop.f32.mrf.mxu0
        %v502 = vadd.f32 %v411, %v501
        %503 = vmatmul.bf16.gmra.mxu0 %v393
        %v504 = vpop.f32.mrf.mxu0
        %v505 = vadd.f32 %v411, %v504
        %v506 = vpop.f32.mrf.mxu0
        %v507 = vadd.f32 %v411, %v506
        %508 = vdwg.mxu0
        %v509 = vmax.f32 %v470, 0.0
        %v510 = vmax.f32 %v472, 0.0
        %v511 = vmax.f32 %v475, 0.0
        %v512 = vmax.f32 %v477, 0.0
        %v513 = vmax.f32 %v480, 0.0
        %v514 = vmax.f32 %v482, 0.0
        %v515 = vmax.f32 %v485, 0.0
        %v516 = vmax.f32 %v487, 0.0
        %v517 = vmax.f32 %v490, 0.0
        %v518 = vmax.f32 %v492, 0.0
        %v519 = vmax.f32 %v495, 0.0
        %v520 = vmax.f32 %v497, 0.0
        %v521 = vmax.f32 %v500, 0.0
        %v522 = vmax.f32 %v502, 0.0
        %v523 = vmax.f32 %v505, 0.0
        %v524 = vmax.f32 %v507, 0.0
        %v525 = vpack.c.bf16 %v510, %v509
        %v526 = vpack.c.bf16 %v512, %v511
        %v527 = vpack.c.bf16 %v514, %v513
        %v528 = vpack.c.bf16 %v516, %v515
        %v529 = vpack.c.bf16 %v518, %v517
        %v530 = vpack.c.bf16 %v520, %v519
        %v531 = vpack.c.bf16 %v522, %v521
        %v532 = vpack.c.bf16 %v524, %v523
        %s533 = scalar_lea.vmem %s2, 64
        %v534 = vld [vmem:[%s533] sm:$0xf]
        %v535 = vld [vmem:[%s533 + $0x4] sm:$0xf]
        %v536 = vld [vmem:[%s533 + $0x8] sm:$0xf]
        %v537 = vld [vmem:[%s533 + $0xc] sm:$0xf]
        %v538 = vld [vmem:[%s533 + $0x10] sm:$0xf]
        %v539 = vld [vmem:[%s533 + $0x14] sm:$0xf]
        %v540 = vld [vmem:[%s533 + $0x18] sm:$0xf]
        %v541 = vld [vmem:[%s533 + $0x1c] sm:$0xf]
        %v542 = vld [vmem:[%s533 + $0x20] sm:$0xf]
        %v543 = vld [vmem:[%s533 + $0x24] sm:$0xf]
        %v544 = vld [vmem:[%s533 + $0x28] sm:$0xf]
        %v545 = vld [vmem:[%s533 + $0x2c] sm:$0xf]
        %v546 = vld [vmem:[%s533 + $0x30] sm:$0xf]
        %v547 = vld [vmem:[%s533 + $0x34] sm:$0xf]
        %v548 = vld [vmem:[%s533 + $0x38] sm:$0xf]
        %v549 = vld [vmem:[%s533 + $0x3c] sm:$0xf]
        %v550 = vld [vmem:[%s4 + $0x2] sm:$0x1]
        %v551 = vperm.slane %v550, 0
        %v568 = vunpack.c.l.b16 %v534
        %v569 = vunpack.c.l.b16 %v535
        %v570 = vunpack.c.l.b16 %v536
        %v571 = vunpack.c.l.b16 %v537
        %v572 = vunpack.c.l.b16 %v538
        %v573 = vunpack.c.l.b16 %v539
        %v574 = vunpack.c.l.b16 %v540
        %v575 = vunpack.c.l.b16 %v541
        %v576 = vunpack.c.l.b16 %v542
        %v577 = vunpack.c.l.b16 %v543
        %v578 = vunpack.c.l.b16 %v544
        %v579 = vunpack.c.l.b16 %v545
        %v580 = vunpack.c.l.b16 %v546
        %v581 = vunpack.c.l.b16 %v547
        %v582 = vunpack.c.l.b16 %v548
        %v583 = vunpack.c.l.b16 %v549
        %v584 = vpack.c.b16 %v569, %v568
        %v585 = vpack.c.b16 %v571, %v570
        %v586 = vpack.c.b16 %v573, %v572
        %v587 = vpack.c.b16 %v575, %v574
        %v588 = vpack.c.b16 %v577, %v576
        %v589 = vpack.c.b16 %v579, %v578
        %v590 = vpack.c.b16 %v581, %v580
        %v591 = vpack.c.b16 %v583, %v582
        %600 = vmatpush.bf16.msra.mxu0 %v591
        %601 = vmatpush.bf16.msra.mxu0 %v590
        %602 = vmatpush.bf16.msra.mxu0 %v589
        %603 = vmatpush.bf16.msra.mxu0 %v588
        %604 = vmatpush.bf16.msra.mxu0 %v587
        %605 = vmatpush.bf16.msra.mxu0 %v586
        %606 = vmatpush.bf16.msra.mxu0 %v585
        %607 = vmatpush.bf16.msra.mxu0 %v584
        %608 = vmatmul.bf16.gmra.mxu0 %v525
        %v609 = vpop.f32.mrf.mxu0
        %v610 = vadd.f32 %v551, %v609
        %v611 = vpop.f32.mrf.mxu0
        %v612 = vadd.f32 %v551, %v611
        %613 = vmatmul.bf16.gmra.mxu0 %v526
        %v614 = vpop.f32.mrf.mxu0
        %v615 = vadd.f32 %v551, %v614
        %v616 = vpop.f32.mrf.mxu0
        %v617 = vadd.f32 %v551, %v616
        %618 = vmatmul.bf16.gmra.mxu0 %v527
        %v619 = vpop.f32.mrf.mxu0
        %v620 = vadd.f32 %v551, %v619
        %v621 = vpop.f32.mrf.mxu0
        %v622 = vadd.f32 %v551, %v621
        %623 = vmatmul.bf16.gmra.mxu0 %v528
        %v624 = vpop.f32.mrf.mxu0
        %v625 = vadd.f32 %v551, %v624
        %v626 = vpop.f32.mrf.mxu0
        %v627 = vadd.f32 %v551, %v626
        %628 = vmatmul.bf16.gmra.mxu0 %v529
        %v629 = vpop.f32.mrf.mxu0
        %v630 = vadd.f32 %v551, %v629
        %v631 = vpop.f32.mrf.mxu0
        %v632 = vadd.f32 %v551, %v631
        %633 = vmatmul.bf16.gmra.mxu0 %v530
        %v634 = vpop.f32.mrf.mxu0
        %v635 = vadd.f32 %v551, %v634
        %v636 = vpop.f32.mrf.mxu0
        %v637 = vadd.f32 %v551, %v636
        %638 = vmatmul.bf16.gmra.mxu0 %v531
        %v639 = vpop.f32.mrf.mxu0
        %v640 = vadd.f32 %v551, %v639
        %v641 = vpop.f32.mrf.mxu0
        %v642 = vadd.f32 %v551, %v641
        %643 = vmatmul.bf16.gmra.mxu0 %v532
        %v644 = vpop.f32.mrf.mxu0
        %v645 = vadd.f32 %v551, %v644
        %v646 = vpop.f32.mrf.mxu0
        %v647 = vadd.f32 %v551, %v646
        %648 = vdwg.mxu0
        %v649 = vmax.f32 %v610, 0.0
        %v650 = vmax.f32 %v612, 0.0
        %v651 = vmax.f32 %v615, 0.0
        %v652 = vmax.f32 %v617, 0.0
        %v653 = vmax.f32 %v620, 0.0
        %v654 = vmax.f32 %v622, 0.0
        %v655 = vmax.f32 %v625, 0.0
        %v656 = vmax.f32 %v627, 0.0
        %v657 = vmax.f32 %v630, 0.0
        %v658 = vmax.f32 %v632, 0.0
        %v659 = vmax.f32 %v635, 0.0
        %v660 = vmax.f32 %v637, 0.0
        %v661 = vmax.f32 %v640, 0.0
        %v662 = vmax.f32 %v642, 0.0
        %v663 = vmax.f32 %v645, 0.0
        %v664 = vmax.f32 %v647, 0.0
        %v665 = vpack.c.bf16 %v650, %v649
        %v666 = vpack.c.bf16 %v652, %v651
        %v667 = vpack.c.bf16 %v654, %v653
        %v668 = vpack.c.bf16 %v656, %v655
        %v669 = vpack.c.bf16 %v658, %v657
        %v670 = vpack.c.bf16 %v660, %v659
        %v671 = vpack.c.bf16 %v662, %v661
        %v672 = vpack.c.bf16 %v664, %v663
        %s673 = scalar_lea.vmem %s2, 128
        %v674 = vld [vmem:[%s673] sm:$0xf]
        %v675 = vld [vmem:[%s673 + $0x4] sm:$0xf]
        %v676 = vld [vmem:[%s673 + $0x8] sm:$0xf]
        %v677 = vld [vmem:[%s673 + $0xc] sm:$0xf]
        %v678 = vld [vmem:[%s673 + $0x10] sm:$0xf]
        %v679 = vld [vmem:[%s673 + $0x14] sm:$0xf]
        %v680 = vld [vmem:[%s673 + $0x18] sm:$0xf]
        %v681 = vld [vmem:[%s673 + $0x1c] sm:$0xf]
        %v682 = vld [vmem:[%s673 + $0x20] sm:$0xf]
        %v683 = vld [vmem:[%s673 + $0x24] sm:$0xf]
        %v684 = vld [vmem:[%s673 + $0x28] sm:$0xf]
        %v685 = vld [vmem:[%s673 + $0x2c] sm:$0xf]
        %v686 = vld [vmem:[%s673 + $0x30] sm:$0xf]
        %v687 = vld [vmem:[%s673 + $0x34] sm:$0xf]
        %v688 = vld [vmem:[%s673 + $0x38] sm:$0xf]
        %v689 = vld [vmem:[%s673 + $0x3c] sm:$0xf]
        %v690 = vld [vmem:[%s4 + $0x3] sm:$0x1]
        %v691 = vperm.slane %v690, 0
        %v708 = vunpack.c.l.b16 %v674
        %v709 = vunpack.c.l.b16 %v675
        %v710 = vunpack.c.l.b16 %v676
        %v711 = vunpack.c.l.b16 %v677
        %v712 = vunpack.c.l.b16 %v678
        %v713 = vunpack.c.l.b16 %v679
        %v714 = vunpack.c.l.b16 %v680
        %v715 = vunpack.c.l.b16 %v681
        %v716 = vunpack.c.l.b16 %v682
        %v717 = vunpack.c.l.b16 %v683
        %v718 = vunpack.c.l.b16 %v684
        %v719 = vunpack.c.l.b16 %v685
        %v720 = vunpack.c.l.b16 %v686
        %v721 = vunpack.c.l.b16 %v687
        %v722 = vunpack.c.l.b16 %v688
        %v723 = vunpack.c.l.b16 %v689
        %v724 = vpack.c.b16 %v709, %v708
        %v725 = vpack.c.b16 %v711, %v710
        %v726 = vpack.c.b16 %v713, %v712
        %v727 = vpack.c.b16 %v715, %v714
        %v728 = vpack.c.b16 %v717, %v716
        %v729 = vpack.c.b16 %v719, %v718
        %v730 = vpack.c.b16 %v721, %v720
        %v731 = vpack.c.b16 %v723, %v722
        %740 = vmatpush.bf16.msra.mxu0 %v731
        %741 = vmatpush.bf16.msra.mxu0 %v730
        %742 = vmatpush.bf16.msra.mxu0 %v729
        %743 = vmatpush.bf16.msra.mxu0 %v728
        %744 = vmatpush.bf16.msra.mxu0 %v727
        %745 = vmatpush.bf16.msra.mxu0 %v726
        %746 = vmatpush.bf16.msra.mxu0 %v725
        %747 = vmatpush.bf16.msra.mxu0 %v724
        %748 = vmatmul.bf16.gmra.mxu0 %v665
        %v749 = vpop.f32.mrf.mxu0
        %v750 = vadd.f32 %v691, %v749
        %v751 = vpop.f32.mrf.mxu0
        %v752 = vadd.f32 %v691, %v751
        %753 = vmatmul.bf16.gmra.mxu0 %v666
        %v754 = vpop.f32.mrf.mxu0
        %v755 = vadd.f32 %v691, %v754
        %v756 = vpop.f32.mrf.mxu0
        %v757 = vadd.f32 %v691, %v756
        %758 = vmatmul.bf16.gmra.mxu0 %v667
        %v759 = vpop.f32.mrf.mxu0
        %v760 = vadd.f32 %v691, %v759
        %v761 = vpop.f32.mrf.mxu0
        %v762 = vadd.f32 %v691, %v761
        %763 = vmatmul.bf16.gmra.mxu0 %v668
        %v764 = vpop.f32.mrf.mxu0
        %v765 = vadd.f32 %v691, %v764
        %v766 = vpop.f32.mrf.mxu0
        %v767 = vadd.f32 %v691, %v766
        %768 = vmatmul.bf16.gmra.mxu0 %v669
        %v769 = vpop.f32.mrf.mxu0
        %v770 = vadd.f32 %v691, %v769
        %v771 = vpop.f32.mrf.mxu0
        %v772 = vadd.f32 %v691, %v771
        %773 = vmatmul.bf16.gmra.mxu0 %v670
        %v774 = vpop.f32.mrf.mxu0
        %v775 = vadd.f32 %v691, %v774
        %v776 = vpop.f32.mrf.mxu0
        %v777 = vadd.f32 %v691, %v776
        %778 = vmatmul.bf16.gmra.mxu0 %v671
        %v779 = vpop.f32.mrf.mxu0
        %v780 = vadd.f32 %v691, %v779
        %v781 = vpop.f32.mrf.mxu0
        %v782 = vadd.f32 %v691, %v781
        %783 = vmatmul.bf16.gmra.mxu0 %v672
        %v784 = vpop.f32.mrf.mxu0
        %v785 = vadd.f32 %v691, %v784
        %v786 = vpop.f32.mrf.mxu0
        %v787 = vadd.f32 %v691, %v786
        %788 = vdwg.mxu0
        %v789 = vmax.f32 %v750, 0.0
        %v790 = vmax.f32 %v752, 0.0
        %v791 = vmax.f32 %v755, 0.0
        %v792 = vmax.f32 %v757, 0.0
        %v793 = vmax.f32 %v760, 0.0
        %v794 = vmax.f32 %v762, 0.0
        %v795 = vmax.f32 %v765, 0.0
        %v796 = vmax.f32 %v767, 0.0
        %v797 = vmax.f32 %v770, 0.0
        %v798 = vmax.f32 %v772, 0.0
        %v799 = vmax.f32 %v775, 0.0
        %v800 = vmax.f32 %v777, 0.0
        %v801 = vmax.f32 %v780, 0.0
        %v802 = vmax.f32 %v782, 0.0
        %v803 = vmax.f32 %v785, 0.0
        %v804 = vmax.f32 %v787, 0.0
        %v805 = vpack.c.bf16 %v790, %v789
        %v806 = vpack.c.bf16 %v792, %v791
        %v807 = vpack.c.bf16 %v794, %v793
        %v808 = vpack.c.bf16 %v796, %v795
        %v809 = vpack.c.bf16 %v798, %v797
        %v810 = vpack.c.bf16 %v800, %v799
        %v811 = vpack.c.bf16 %v802, %v801
        %v812 = vpack.c.bf16 %v804, %v803
        %s813 = scalar_lea.vmem %s2, 192
        %v814 = vld [vmem:[%s813] sm:$0xf]
        %v815 = vld [vmem:[%s813 + $0x4] sm:$0xf]
        %v816 = vld [vmem:[%s813 + $0x8] sm:$0xf]
        %v817 = vld [vmem:[%s813 + $0xc] sm:$0xf]
        %v818 = vld [vmem:[%s813 + $0x10] sm:$0xf]
        %v819 = vld [vmem:[%s813 + $0x14] sm:$0xf]
        %v820 = vld [vmem:[%s813 + $0x18] sm:$0xf]
        %v821 = vld [vmem:[%s813 + $0x1c] sm:$0xf]
        %v822 = vld [vmem:[%s813 + $0x20] sm:$0xf]
        %v823 = vld [vmem:[%s813 + $0x24] sm:$0xf]
        %v824 = vld [vmem:[%s813 + $0x28] sm:$0xf]
        %v825 = vld [vmem:[%s813 + $0x2c] sm:$0xf]
        %v826 = vld [vmem:[%s813 + $0x30] sm:$0xf]
        %v827 = vld [vmem:[%s813 + $0x34] sm:$0xf]
        %v828 = vld [vmem:[%s813 + $0x38] sm:$0xf]
        %v829 = vld [vmem:[%s813 + $0x3c] sm:$0xf]
        %v830 = vld [vmem:[%s4 + $0x4] sm:$0x1]
        %v831 = vperm.slane %v830, 0
        %v848 = vunpack.c.l.b16 %v814
        %v849 = vunpack.c.l.b16 %v815
        %v850 = vunpack.c.l.b16 %v816
        %v851 = vunpack.c.l.b16 %v817
        %v852 = vunpack.c.l.b16 %v818
        %v853 = vunpack.c.l.b16 %v819
        %v854 = vunpack.c.l.b16 %v820
        %v855 = vunpack.c.l.b16 %v821
        %v856 = vunpack.c.l.b16 %v822
        %v857 = vunpack.c.l.b16 %v823
        %v858 = vunpack.c.l.b16 %v824
        %v859 = vunpack.c.l.b16 %v825
        %v860 = vunpack.c.l.b16 %v826
        %v861 = vunpack.c.l.b16 %v827
        %v862 = vunpack.c.l.b16 %v828
        %v863 = vunpack.c.l.b16 %v829
        %v864 = vpack.c.b16 %v849, %v848
        %v865 = vpack.c.b16 %v851, %v850
        %v866 = vpack.c.b16 %v853, %v852
        %v867 = vpack.c.b16 %v855, %v854
        %v868 = vpack.c.b16 %v857, %v856
        %v869 = vpack.c.b16 %v859, %v858
        %v870 = vpack.c.b16 %v861, %v860
        %v871 = vpack.c.b16 %v863, %v862
        %880 = vmatpush.bf16.msra.mxu0 %v871
        %881 = vmatpush.bf16.msra.mxu0 %v870
        %882 = vmatpush.bf16.msra.mxu0 %v869
        %883 = vmatpush.bf16.msra.mxu0 %v868
        %884 = vmatpush.bf16.msra.mxu0 %v867
        %885 = vmatpush.bf16.msra.mxu0 %v866
        %886 = vmatpush.bf16.msra.mxu0 %v865
        %887 = vmatpush.bf16.msra.mxu0 %v864
        %888 = vmatmul.bf16.gmra.mxu0 %v805
        %v889 = vpop.f32.mrf.mxu0
        %v890 = vadd.f32 %v831, %v889
        %v891 = vpop.f32.mrf.mxu0
        %v892 = vadd.f32 %v831, %v891
        %893 = vmatmul.bf16.gmra.mxu0 %v806
        %v894 = vpop.f32.mrf.mxu0
        %v895 = vadd.f32 %v831, %v894
        %v896 = vpop.f32.mrf.mxu0
        %v897 = vadd.f32 %v831, %v896
        %898 = vmatmul.bf16.gmra.mxu0 %v807
        %v899 = vpop.f32.mrf.mxu0
        %v900 = vadd.f32 %v831, %v899
        %v901 = vpop.f32.mrf.mxu0
        %v902 = vadd.f32 %v831, %v901
        %903 = vmatmul.bf16.gmra.mxu0 %v808
        %v904 = vpop.f32.mrf.mxu0
        %v905 = vadd.f32 %v831, %v904
        %v906 = vpop.f32.mrf.mxu0
        %v907 = vadd.f32 %v831, %v906
        %908 = vmatmul.bf16.gmra.mxu0 %v809
        %v909 = vpop.f32.mrf.mxu0
        %v910 = vadd.f32 %v831, %v909
        %v911 = vpop.f32.mrf.mxu0
        %v912 = vadd.f32 %v831, %v911
        %913 = vmatmul.bf16.gmra.mxu0 %v810
        %v914 = vpop.f32.mrf.mxu0
        %v915 = vadd.f32 %v831, %v914
        %v916 = vpop.f32.mrf.mxu0
        %v917 = vadd.f32 %v831, %v916
        %918 = vmatmul.bf16.gmra.mxu0 %v811
        %v919 = vpop.f32.mrf.mxu0
        %v920 = vadd.f32 %v831, %v919
        %v921 = vpop.f32.mrf.mxu0
        %v922 = vadd.f32 %v831, %v921
        %923 = vmatmul.bf16.gmra.mxu0 %v812
        %v924 = vpop.f32.mrf.mxu0
        %v925 = vadd.f32 %v831, %v924
        %v926 = vpop.f32.mrf.mxu0
        %v927 = vadd.f32 %v831, %v926
        %928 = vdwg.mxu0
        %v929 = vmax.f32 %v890, 0.0
        %v930 = vmax.f32 %v892, 0.0
        %v931 = vmax.f32 %v895, 0.0
        %v932 = vmax.f32 %v897, 0.0
        %v933 = vmax.f32 %v900, 0.0
        %v934 = vmax.f32 %v902, 0.0
        %v935 = vmax.f32 %v905, 0.0
        %v936 = vmax.f32 %v907, 0.0
        %v937 = vmax.f32 %v910, 0.0
        %v938 = vmax.f32 %v912, 0.0
        %v939 = vmax.f32 %v915, 0.0
        %v940 = vmax.f32 %v917, 0.0
        %v941 = vmax.f32 %v920, 0.0
        %v942 = vmax.f32 %v922, 0.0
        %v943 = vmax.f32 %v925, 0.0
        %v944 = vmax.f32 %v927, 0.0
        %v945 = vpack.c.bf16 %v930, %v929
        %v946 = vpack.c.bf16 %v932, %v931
        %v947 = vpack.c.bf16 %v934, %v933
        %v948 = vpack.c.bf16 %v936, %v935
        %v949 = vpack.c.bf16 %v938, %v937
        %v950 = vpack.c.bf16 %v940, %v939
        %v951 = vpack.c.bf16 %v942, %v941
        %v952 = vpack.c.bf16 %v944, %v943
        %v953 = vld [vmem:[%s3] sm:$0x1]
        %v954 = vld [vmem:[#allocation2] sm:$0x1]
        %956 = vset.pattern.permute.xlu0 0
        %957 = vperm.xlu0 %956, %v954
        %v958 = vpop.permute.xlu0 %957
        %v960 = vperm.slane %v958, 0
        %961 = vmatpush.bf16.xpose.msra.mxu0 %v952
        %962 = vmatpush.bf16.xpose.msra.mxu0 %v951
        %963 = vmatpush.bf16.xpose.msra.mxu0 %v950
        %964 = vmatpush.bf16.xpose.msra.mxu0 %v949
        %965 = vmatpush.bf16.xpose.msra.mxu0 %v948
        %966 = vmatpush.bf16.xpose.msra.mxu0 %v947
        %967 = vmatpush.bf16.xpose.msra.mxu0 %v946
        %968 = vmatpush.bf16.xpose.msra.mxu0 %v945
        %969 = vmatmul.bf16.gmra.mxu0 %v953
        %v970 = vpop.f32.mrf.mxu0
        %v971 = vadd.f32 %v960, %v970
        %v972 = vpop.f32.mrf.mxu0
        %973 = vdwg.mxu0
        %974 = vst [vmem:[%s246] sm:$0x1] %v971
        %s975 = sand.u32 %s161, 1
        %s976 = scalar_lea.sflag [#allocation4], %s975
        %s977 = sand.u32 %s161, 1
        %s978 = scalar_lea.vmem [#allocation3], %s977
        // Predicated region
        $region45: #{tpu_custom_call.1} parent=43 // pred_check
          %p979 = pneg %p171
        $region46: #{tpu_custom_call.1} parent=43 // pred_check_branch
          %981 = sbr.rel (%p979) target = $region48
        $region47: #{tpu_custom_call.1} parent=43 // pred_region
          %983 = vsyncadd %s976, 0
          %s984 = scalar_lea.hbm %s6, %s22
          %s986 = sshll.u32 %s978, 4
          %s987 = int_to_ptr.vmem [resolvable:$true] %s986
          %s988 = sshll.u32 %s984, 4
          %s989 = int_to_ptr.hbm [resolvable:$true] %s988
          %991 = dma.vmem_to_hbm [thread:$0]  %s987, 16, %s989, %s976
        $region48: #{tpu_custom_call.1} parent=43 // pred_fallthru
          _
      $region44: #{tpu_custom_call.1} parent=5 // pred_fallthru
        _
      %p992 = scmp.le.s32.totalorder 2, %s17
      // Predicated region
      $region49: #{tpu_custom_call.1} parent=5 // pred_check
        %p993 = pneg %p992
      $region50: #{tpu_custom_call.1} parent=5 // pred_check_branch
        %995 = sbr.rel (%p993) target = $region52
      $region51: #{tpu_custom_call.1} parent=5 // pred_region
        %s996 = ssub.s32 %s17, 2
        // Predicated region
        $region53: #{tpu_custom_call.1} parent=51 // pred_check
          %p997 = pneg %p177
        $region54: #{tpu_custom_call.1} parent=51 // pred_check_branch
          %999 = sbr.rel (%p997) target = $region56
        $region55: #{tpu_custom_call.1} parent=51 // pred_region
          %s1000 = sand.u32 %s162, 1
          %s1001 = scalar_lea.sflag [#allocation4], %s1000
          %s1002 = sand.u32 %s162, 1
          %s1003 = scalar_lea.vmem [#allocation3], %s1002
          %1005 = dma.done %s1001, 16
        $region56: #{tpu_custom_call.1} parent=51 // pred_fallthru
          _
      $region52: #{tpu_custom_call.1} parent=5 // pred_fallthru
        _
    $region6: #{tpu_custom_call.1} parent=1 // loop_footer
      %s21 = sadd.s32 1, %s17
    $region7: #{tpu_custom_call.1} parent=1 // loop_footer_branch
      %16 = sbr.rel target = $region3
    $region8: #{tpu_custom_call.1} parent=1 // loop_exit
      _
    %1006 = vsyncpa [#allocation4], 1
    %s1007 = scalar_lea.sflag [#allocation4], 1
    %1008 = vsyncpa %s1007, 1

</llo_original>
